<compile_context>
chip_gen: v7x
topology: tpu7x:2x2x1
jax: 0.10.0
libtpu: 0.0.40
codegen_flags: <defaults>
</compile_context>

<pallas_src>
import functools

import jax
import jax.numpy as jnp
from jax import lax
from jax.experimental import pallas as pl
from jax.experimental.pallas import tpu as pltpu


_NEG_FILL = -1e30  # finite "minus infinity" used to mask ragged logits columns


def _round_up(x, m):
    return ((x + m - 1) // m) * m


def _select_tiles(B, C):
    """Pick (tb, tc, vmem_limit) with a light chip-specific adjustment."""
    try:
        kind = jax.devices()[0].device_kind.lower()
    except Exception:  # pragma: no cover - defensive
        kind = ""
    is_v7 = "v7" in kind

    tc_cap = 4096 if is_v7 else 2048
    tc = min(tc_cap, _round_up(C, 128))

    tb = min(256, _round_up(B, 8))
    if is_v7 and B >= 16 and _round_up(B, tb) // tb < 2:
        # Ensure >= 2 B blocks so the "parallel" axis shards across both TCs.
        tb = _round_up(-(-B // 2), 8)

    vmem = (48 if is_v7 else 32) * 1024 * 1024
    return tb, tc, vmem


def _ce_argmax_kernel(logits_ref, target_ref, loss_ref, pred_ref,
                      m_sc, l_sc, corr_sc, idx_sc, *, num_classes):
    """Online-softmax cross-entropy + argmax over C blocks.

    logits_ref : (TB, TC) native dtype (f32/bf16)
    target_ref : (TB, 1)  int32
    loss_ref   : (TB, 1)  f32   per-row CE loss (written on last C block)
    pred_ref   : (TB, 1)  int32 per-row argmax  (written on last C block)
    scratch    : m (TB,1) f32, l (TB,1) f32, corr (TB,1) f32, idx (TB,1) i32
    """
    c = pl.program_id(1)
    nc = pl.num_programs(1)
    tb, tc = logits_ref.shape
    in_dtype = logits_ref.dtype

    @pl.when(c == 0)
    def _init():
        m_sc[...] = jnp.full_like(m_sc, -jnp.inf)
        l_sc[...] = jnp.zeros_like(l_sc)
        corr_sc[...] = jnp.zeros_like(corr_sc)
        idx_sc[...] = jnp.zeros_like(idx_sc)

    x_raw = logits_ref[...]                                # (TB, TC) native
    tgt = target_ref[...]                                  # (TB, 1) int32

    # Local class index per lane: (1, TC), no per-element global-index add.
    col = lax.broadcasted_iota(jnp.int32, (1, tc), 1)

    # Mask garbage columns of the ragged last C block. This branch is resolved
    # at trace time: when tc divides C nothing is emitted.
    if num_classes % tc != 0:
        valid = col < (num_classes - c * tc)               # (1, TC) bool
        x_raw = jnp.where(valid, x_raw, jnp.asarray(_NEG_FILL, dtype=in_dtype))

    # Max / argmax comparisons in the native dtype (bf16 compares on v6e/v7x).
    tile_max_raw = jnp.max(x_raw, axis=-1, keepdims=True)              # (TB,1)
    tile_arg = jnp.min(jnp.where(x_raw == tile_max_raw, col, jnp.int32(2 ** 30)),
                       axis=-1, keepdims=True) + c * tc                # (TB,1)

    # f32 path: exp / accumulators stay in f32 for accuracy.
    x = x_raw.astype(jnp.float32)                                      # (TB,TC)
    tile_max = tile_max_raw.astype(jnp.float32)                        # (TB,1)

    # One-hot gather of the target-class logit (local index compare).
    tgt_local = tgt - c * tc                                           # (TB,1)
    corr_tile = jnp.sum(jnp.where(col == tgt_local, x, 0.0),
                        axis=-1, keepdims=True)                        # (TB,1)

    # Online-softmax update.
    m_old = m_sc[...]
    m_new = jnp.maximum(m_old, tile_max)
    # First maximal index overall: earlier C blocks win ties (strict >).
    idx_sc[...] = jnp.where(tile_max > m_old, tile_arg, idx_sc[...])
    l_sc[...] = l_sc[...] * jnp.exp(m_old - m_new) + \
        jnp.sum(jnp.exp(x - m_new), axis=-1, keepdims=True)
    m_sc[...] = m_new
    corr_sc[...] = corr_sc[...] + corr_tile

    @pl.when(c == nc - 1)
    def _finalize():
        loss_ref[...] = m_sc[...] + jnp.log(l_sc[...]) - corr_sc[...]
        pred_ref[...] = idx_sc[...]


def _ce_forward(logits, target, *, tb=None, tc=None):
    """Per-row cross-entropy and argmax via the Pallas kernel.

    Returns (per_row_loss (B,) f32, pred (B,) int32). The (tiny) mean / masked
    mean over B is finished in JAX by the caller.
    """
    B, C = logits.shape
    tb_d, tc_d, vmem = _select_tiles(B, C)
    if tb is None:
        tb = tb_d
    if tc is None:
        tc = tc_d

    nb = pl.cdiv(B, tb)
    nc = pl.cdiv(C, tc)

    tgt2d = target.astype(jnp.int32).reshape(B, 1)

    itemsize = jnp.dtype(logits.dtype).itemsize
    cost = pl.CostEstimate(
        flops=6 * B * C,
        transcendentals=B * C,
        bytes_accessed=B * C * itemsize + B * 4 + nb * tb * 8,
    )

    kernel = functools.partial(_ce_argmax_kernel, num_classes=C)

    loss_col, pred_col = pl.pallas_call(
        kernel,
        out_shape=(
            jax.ShapeDtypeStruct((nb * tb, 1), jnp.float32),
            jax.ShapeDtypeStruct((nb * tb, 1), jnp.int32),
        ),
        grid_spec=pltpu.PrefetchScalarGridSpec(
            num_scalar_prefetch=0,
            grid=(nb, nc),
            in_specs=[
                pl.BlockSpec((tb, tc), lambda b, c: (b, c)),
                pl.BlockSpec((tb, 1), lambda b, c: (b, 0)),
            ],
            out_specs=[
                pl.BlockSpec((tb, 1), lambda b, c: (b, 0)),
                pl.BlockSpec((tb, 1), lambda b, c: (b, 0)),
            ],
            scratch_shapes=[
                pltpu.VMEM((tb, 1), jnp.float32),   # running max m
                pltpu.VMEM((tb, 1), jnp.float32),   # running sum-exp l
                pltpu.VMEM((tb, 1), jnp.float32),   # running correct logit
                pltpu.VMEM((tb, 1), jnp.int32),     # running argmax index
            ],
        ),
        compiler_params=pltpu.CompilerParams(
            dimension_semantics=("parallel", "arbitrary"),
            vmem_limit_bytes=vmem,
        ),
        cost_estimate=cost,
    )(logits, tgt2d)

    per_row_loss = loss_col[:B, 0]
    pred = pred_col[:B, 0]
    return per_row_loss, pred


class StudentIncrementalCrossEntropyLossPallas:
    """JAX/Pallas re-implementation of the PyTorch module's forward pass."""

    def __init__(self, threshold=0.5, lambda_fuzzy=1.0, gamma=2.0,
                 alpha=1.0, beta=1.0):
        self.threshold = threshold
        self.lambda_fuzzy = lambda_fuzzy
        self.gamma = gamma
        self.alpha = alpha
        self.beta = beta
        self.inf_target = -1

    def __call__(self, logits, target, incremental_mask, is_incremental):
        per_row_loss, pred = _ce_forward(logits, target)
        if not is_incremental:
            return jnp.mean(per_row_loss), pred
        # incremental: CE averaged only over "known" rows; fuzzy term is 0 in
        # the reference implementation, so total_loss == loss_known.
        known = jnp.logical_not(incremental_mask).astype(jnp.float32)
        den = jnp.sum(known)
        loss_known = jnp.where(den > 0.0,
                               jnp.sum(per_row_loss * known) /
                               jnp.maximum(den, 1.0),
                               0.0)
        fuzzy_loss = 0.0  # matches reference: both branches set fuzzy_loss = 0.0
        total_loss = loss_known + self.lambda_fuzzy * fuzzy_loss
        return total_loss, pred


def _reference_jax(logits, target, incremental_mask, is_incremental):
    """Pure-JAX reference for sanity checks."""
    logp = jax.nn.log_softmax(logits.astype(jnp.float32), axis=-1)
    per_row = -jnp.take_along_axis(logp, target[:, None].astype(jnp.int32),
                                   axis=-1)[:, 0]
    pred = jnp.argmax(logits.astype(jnp.float32), axis=-1).astype(jnp.int32)
    if not is_incremental:
        return jnp.mean(per_row), pred
    known = jnp.logical_not(incremental_mask).astype(jnp.float32)
    den = jnp.sum(known)
    loss = jnp.where(den > 0, jnp.sum(per_row * known) / jnp.maximum(den, 1.0),
                     0.0)
    return loss, pred


if __name__ == "__main__":
    key = jax.random.PRNGKey(0)
    loss_mod = StudentIncrementalCrossEntropyLossPallas()

    # ---- Test 1: small single-tile case (f32), both forward branches. ----
    B, C = 8, 32
    k1, k2, k3, k4, k5, k6, k7 = jax.random.split(key, 7)
    logits = jax.random.normal(k1, (B, C), dtype=jnp.float32)
    target = jax.random.randint(k2, (B,), 0, C, dtype=jnp.int32)
    inc_mask = jax.random.bernoulli(k3, 0.4, (B,))

    loss0, pred0 = loss_mod(logits, target, inc_mask, is_incremental=False)
    loss1, pred1 = loss_mod(logits, target, inc_mask, is_incremental=True)
    jax.block_until_ready((loss0, pred0, loss1, pred1))

    ref_loss0, ref_pred0 = _reference_jax(logits, target, inc_mask, False)
    ref_loss1, ref_pred1 = _reference_jax(logits, target, inc_mask, True)
    assert jnp.allclose(loss0, ref_loss0, atol=1e-5), (loss0, ref_loss0)
    assert jnp.allclose(loss1, ref_loss1, atol=1e-5), (loss1, ref_loss1)
    assert jnp.array_equal(pred0, ref_pred0)
    assert jnp.array_equal(pred1, ref_pred1)

    # "No known rows" branch -> loss == 0.0.
    all_inc = jnp.ones((B,), dtype=bool)
    loss_none, _ = loss_mod(logits, target, all_inc, is_incremental=True)
    assert jnp.allclose(loss_none, 0.0, atol=1e-7)

    # ---- Test 2: ragged B and ragged C (no host-side padding; in-kernel
    # column mask + wrapper [:B] slice). ----
    B2, C2 = 13, 200
    logits2 = jax.random.normal(k4, (B2, C2), dtype=jnp.float32) * 2.0
    target2 = jax.random.randint(k5, (B2,), 0, C2, dtype=jnp.int32)

    per_row2, pred2 = _ce_forward(logits2, target2, tb=8, tc=128)
    jax.block_until_ready((per_row2, pred2))

    logp2 = jax.nn.log_softmax(logits2, axis=-1)
    ref_per_row2 = -jnp.take_along_axis(logp2, target2[:, None], axis=-1)[:, 0]
    ref_pred2 = jnp.argmax(logits2, axis=-1).astype(jnp.int32)
    assert jnp.allclose(per_row2, ref_per_row2, atol=1e-5), \
        (per_row2, ref_per_row2)
    assert jnp.array_equal(pred2, ref_pred2)

    # ---- Test 3: multi-block grid (B and C axes) with bf16 input, in-kernel
    # bf16 compares / f32 exp path, online-softmax across C blocks. ----
    B3, C3 = 16, 384
    logits3 = (jax.random.normal(k6, (B3, C3), dtype=jnp.float32) * 3.0
               ).astype(jnp.bfloat16)
    target3 = jax.random.randint(k7, (B3,), 0, C3, dtype=jnp.int32)

    per_row3, pred3 = _ce_forward(logits3, target3, tb=8, tc=128)
    jax.block_until_ready((per_row3, pred3))

    x3 = logits3.astype(jnp.float32)
    logp3 = jax.nn.log_softmax(x3, axis=-1)
    ref_per_row3 = -jnp.take_along_axis(logp3, target3[:, None], axis=-1)[:, 0]
    ref_pred3 = jnp.argmax(x3, axis=-1).astype(jnp.int32)
    assert jnp.allclose(per_row3, ref_per_row3, atol=1e-4), \
        (per_row3, ref_per_row3)
    assert jnp.array_equal(pred3, ref_pred3)

    print("KERNEL_OK")
</pallas_src>

<mosaic_0001>
module attributes {stable_mosaic.version = 11 : i64} {
  func.func @_ce_argmax_kernel(%arg0: i32, %arg1: i32, %arg2: memref<8x128xf32, #tpu.memory_space<vmem>>, %arg3: memref<8x1xi32, #tpu.memory_space<vmem>>, %arg4: memref<8x1xf32, #tpu.memory_space<vmem>>, %arg5: memref<8x1xi32, #tpu.memory_space<vmem>>, %arg6: memref<8x1xf32, #tpu.memory_space<vmem>>, %arg7: memref<8x1xf32, #tpu.memory_space<vmem>>, %arg8: memref<8x1xf32, #tpu.memory_space<vmem>>, %arg9: memref<8x1xi32, #tpu.memory_space<vmem>>) attributes {dimension_semantics = [#tpu.dimension_semantics<parallel>, #tpu.dimension_semantics<arbitrary>], iteration_bounds = array<i64: 1, 1>, scalar_prefetch = 0 : i64, scratch_operands = 4 : i64, tpu.core_type = #tpu.core_type<tc>, window_params = [{transform_indices = @transform_0, window_bounds = array<i64: 8, 128>}, {transform_indices = @transform_1, window_bounds = array<i64: 8, 1>}, {transform_indices = @transform_2, window_bounds = array<i64: 8, 1>}, {transform_indices = @transform_3, window_bounds = array<i64: 8, 1>}]} {
    %c0_i32 = arith.constant 0 : i32
    %0 = arith.cmpi eq, %arg1, %c0_i32 : i32
    %1 = arith.extui %0 : i1 to i32
    %c0_i32_0 = arith.constant 0 : i32
    %2 = arith.cmpi ne, %1, %c0_i32_0 : i32
    scf.if %2 {
      %cst_29 = arith.constant 0xFF800000 : f32
      %61 = vector.broadcast %cst_29 : f32 to vector<8x1xf32>
      %c0_30 = arith.constant 0 : index
      %c0_31 = arith.constant 0 : index
      %62 = vector.load %arg6[%c0_30, %c0_31] : memref<8x1xf32, #tpu.memory_space<vmem>>, vector<8x1xf32>
      tpu.vector_store %arg6[%c0_30, %c0_31], %61 {strides = array<i32>} : memref<8x1xf32, #tpu.memory_space<vmem>>, vector<8x1xf32>,
      %cst_32 = arith.constant 0.000000e+00 : f32
      %63 = vector.broadcast %cst_32 : f32 to vector<8x1xf32>
      %c0_33 = arith.constant 0 : index
      %c0_34 = arith.constant 0 : index
      %64 = vector.load %arg7[%c0_33, %c0_34] : memref<8x1xf32, #tpu.memory_space<vmem>>, vector<8x1xf32>
      tpu.vector_store %arg7[%c0_33, %c0_34], %63 {strides = array<i32>} : memref<8x1xf32, #tpu.memory_space<vmem>>, vector<8x1xf32>,
      %cst_35 = arith.constant 0.000000e+00 : f32
      %65 = vector.broadcast %cst_35 : f32 to vector<8x1xf32>
      %c0_36 = arith.constant 0 : index
      %c0_37 = arith.constant 0 : index
      %66 = vector.load %arg8[%c0_36, %c0_37] : memref<8x1xf32, #tpu.memory_space<vmem>>, vector<8x1xf32>
      tpu.vector_store %arg8[%c0_36, %c0_37], %65 {strides = array<i32>} : memref<8x1xf32, #tpu.memory_space<vmem>>, vector<8x1xf32>,
      %c0_i32_38 = arith.constant 0 : i32
      %67 = vector.broadcast %c0_i32_38 : i32 to vector<8x1xi32>
      %c0_39 = arith.constant 0 : index
      %c0_40 = arith.constant 0 : index
      %68 = vector.load %arg9[%c0_39, %c0_40] : memref<8x1xi32, #tpu.memory_space<vmem>>, vector<8x1xi32>
      tpu.vector_store %arg9[%c0_39, %c0_40], %67 {strides = array<i32>} : memref<8x1xi32, #tpu.memory_space<vmem>>, vector<8x1xi32>,
    } else {
    }
    %c0 = arith.constant 0 : index
    %c0_1 = arith.constant 0 : index
    %3 = vector.load %arg2[%c0, %c0_1] : memref<8x128xf32, #tpu.memory_space<vmem>>, vector<8x128xf32>
    %c0_2 = arith.constant 0 : index
    %c0_3 = arith.constant 0 : index
    %4 = vector.load %arg3[%c0_2, %c0_3] : memref<8x1xi32, #tpu.memory_space<vmem>>, vector<8x1xi32>
    %5 = tpu.iota {dimensions = array<i32: 1>} : vector<1x128xi32>
    %c128_i32 = arith.constant 128 : i32
    %6 = arith.muli %arg1, %c128_i32 : i32
    %c32_i32 = arith.constant 32 : i32
    %7 = arith.subi %c32_i32, %6 : i32
    %8 = vector.broadcast %7 : i32 to vector<1x128xi32>
    %9 = arith.cmpi slt, %5, %8 : vector<1x128xi32>
    %cst = arith.constant -1.000000e+30 : f32
    %10 = vector.shape_cast %9 : vector<1x128xi1> to vector<1x128xi1>
    %11 = vector.broadcast %10 : vector<1x128xi1> to vector<8x128xi1>
    %12 = vector.broadcast %cst : f32 to vector<8x128xf32>
    %13 = arith.select %11, %3, %12 : vector<8x128xi1>, vector<8x128xf32>
    %cst_4 = arith.constant dense<0xFF800000> : vector<8xf32>
    %14 = vector.multi_reduction <maximumf>, %13, %cst_4 [1] : vector<8x128xf32> to vector<8xf32>
    %15 = vector.shape_cast %14 : vector<8xf32> to vector<8x1xf32>
    %16 = vector.broadcast %15 : vector<8x1xf32> to vector<8x128xf32>
    %17 = arith.cmpf oeq, %13, %16 : vector<8x128xf32>
    %c1073741824_i32 = arith.constant 1073741824 : i32
    %18 = vector.shape_cast %5 : vector<1x128xi32> to vector<1x128xi32>
    %19 = vector.broadcast %18 : vector<1x128xi32> to vector<8x128xi32>
    %20 = vector.broadcast %c1073741824_i32 : i32 to vector<8x128xi32>
    %21 = arith.select %17, %19, %20 : vector<8x128xi1>, vector<8x128xi32>
    %cst_5 = arith.constant dense<2147483647> : vector<8xi32>
    %22 = vector.multi_reduction <minsi>, %21, %cst_5 [1] : vector<8x128xi32> to vector<8xi32>
    %23 = vector.shape_cast %22 : vector<8xi32> to vector<8x1xi32>
    %c128_i32_6 = arith.constant 128 : i32
    %24 = arith.muli %arg1, %c128_i32_6 : i32
    %25 = vector.broadcast %24 : i32 to vector<8x1xi32>
    %26 = arith.addi %23, %25 : vector<8x1xi32>
    %c128_i32_7 = arith.constant 128 : i32
    %27 = arith.muli %arg1, %c128_i32_7 : i32
    %28 = vector.broadcast %27 : i32 to vector<8x1xi32>
    %29 = arith.subi %4, %28 : vector<8x1xi32>
    %30 = vector.broadcast %5 : vector<1x128xi32> to vector<8x128xi32>
    %31 = vector.broadcast %29 : vector<8x1xi32> to vector<8x128xi32>
    %32 = arith.cmpi eq, %30, %31 : vector<8x128xi32>
    %cst_8 = arith.constant 0.000000e+00 : f32
    %33 = vector.broadcast %cst_8 : f32 to vector<8x128xf32>
    %34 = arith.select %32, %13, %33 : vector<8x128xi1>, vector<8x128xf32>
    %cst_9 = arith.constant dense<0.000000e+00> : vector<8xf32>
    %35 = vector.multi_reduction <add>, %34, %cst_9 [1] : vector<8x128xf32> to vector<8xf32>
    %36 = vector.shape_cast %35 : vector<8xf32> to vector<8x1xf32>
    %c0_10 = arith.constant 0 : index
    %c0_11 = arith.constant 0 : index
    %37 = vector.load %arg6[%c0_10, %c0_11] : memref<8x1xf32, #tpu.memory_space<vmem>>, vector<8x1xf32>
    %38 = arith.maximumf %37, %15 : vector<8x1xf32>
    %39 = arith.cmpf ogt, %15, %37 : vector<8x1xf32>
    %c0_12 = arith.constant 0 : index
    %c0_13 = arith.constant 0 : index
    %40 = vector.load %arg9[%c0_12, %c0_13] : memref<8x1xi32, #tpu.memory_space<vmem>>, vector<8x1xi32>
    %41 = arith.select %39, %26, %40 : vector<8x1xi1>, vector<8x1xi32>
    %c0_14 = arith.constant 0 : index
    %c0_15 = arith.constant 0 : index
    %42 = vector.load %arg9[%c0_14, %c0_15] : memref<8x1xi32, #tpu.memory_space<vmem>>, vector<8x1xi32>
    tpu.vector_store %arg9[%c0_14, %c0_15], %41 {strides = array<i32>} : memref<8x1xi32, #tpu.memory_space<vmem>>, vector<8x1xi32>,
    %c0_16 = arith.constant 0 : index
    %c0_17 = arith.constant 0 : index
    %43 = vector.load %arg7[%c0_16, %c0_17] : memref<8x1xf32, #tpu.memory_space<vmem>>, vector<8x1xf32>
    %44 = arith.subf %37, %38 : vector<8x1xf32>
    %45 = math.exp %44 : vector<8x1xf32>
    %46 = arith.mulf %43, %45 : vector<8x1xf32>
    %47 = vector.broadcast %38 : vector<8x1xf32> to vector<8x128xf32>
    %48 = arith.subf %13, %47 : vector<8x128xf32>
    %49 = math.exp %48 : vector<8x128xf32>
    %cst_18 = arith.constant dense<0.000000e+00> : vector<8xf32>
    %50 = vector.multi_reduction <add>, %49, %cst_18 [1] : vector<8x128xf32> to vector<8xf32>
    %51 = vector.shape_cast %50 : vector<8xf32> to vector<8x1xf32>
    %52 = arith.addf %46, %51 : vector<8x1xf32>
    %c0_19 = arith.constant 0 : index
    %c0_20 = arith.constant 0 : index
    %53 = vector.load %arg7[%c0_19, %c0_20] : memref<8x1xf32, #tpu.memory_space<vmem>>, vector<8x1xf32>
    tpu.vector_store %arg7[%c0_19, %c0_20], %52 {strides = array<i32>} : memref<8x1xf32, #tpu.memory_space<vmem>>, vector<8x1xf32>,
    %c0_21 = arith.constant 0 : index
    %c0_22 = arith.constant 0 : index
    %54 = vector.load %arg6[%c0_21, %c0_22] : memref<8x1xf32, #tpu.memory_space<vmem>>, vector<8x1xf32>
    tpu.vector_store %arg6[%c0_21, %c0_22], %38 {strides = array<i32>} : memref<8x1xf32, #tpu.memory_space<vmem>>, vector<8x1xf32>,
    %c0_23 = arith.constant 0 : index
    %c0_24 = arith.constant 0 : index
    %55 = vector.load %arg8[%c0_23, %c0_24] : memref<8x1xf32, #tpu.memory_space<vmem>>, vector<8x1xf32>
    %56 = arith.addf %55, %36 : vector<8x1xf32>
    %c0_25 = arith.constant 0 : index
    %c0_26 = arith.constant 0 : index
    %57 = vector.load %arg8[%c0_25, %c0_26] : memref<8x1xf32, #tpu.memory_space<vmem>>, vector<8x1xf32>
    tpu.vector_store %arg8[%c0_25, %c0_26], %56 {strides = array<i32>} : memref<8x1xf32, #tpu.memory_space<vmem>>, vector<8x1xf32>,
    %c0_i32_27 = arith.constant 0 : i32
    %58 = arith.cmpi eq, %arg1, %c0_i32_27 : i32
    %59 = arith.extui %58 : i1 to i32
    %c0_i32_28 = arith.constant 0 : i32
    %60 = arith.cmpi ne, %59, %c0_i32_28 : i32
    scf.if %60 {
      %c0_29 = arith.constant 0 : index
      %c0_30 = arith.constant 0 : index
      %61 = vector.load %arg6[%c0_29, %c0_30] : memref<8x1xf32, #tpu.memory_space<vmem>>, vector<8x1xf32>
      %c0_31 = arith.constant 0 : index
      %c0_32 = arith.constant 0 : index
      %62 = vector.load %arg7[%c0_31, %c0_32] : memref<8x1xf32, #tpu.memory_space<vmem>>, vector<8x1xf32>
      %63 = math.log %62 : vector<8x1xf32>
      %64 = arith.addf %61, %63 : vector<8x1xf32>
      %c0_33 = arith.constant 0 : index
      %c0_34 = arith.constant 0 : index
      %65 = vector.load %arg8[%c0_33, %c0_34] : memref<8x1xf32, #tpu.memory_space<vmem>>, vector<8x1xf32>
      %66 = arith.subf %64, %65 : vector<8x1xf32>
      %c0_35 = arith.constant 0 : index
      %c0_36 = arith.constant 0 : index
      %67 = vector.load %arg4[%c0_35, %c0_36] : memref<8x1xf32, #tpu.memory_space<vmem>>, vector<8x1xf32>
      tpu.vector_store %arg4[%c0_35, %c0_36], %66 {strides = array<i32>} : memref<8x1xf32, #tpu.memory_space<vmem>>, vector<8x1xf32>,
      %c0_37 = arith.constant 0 : index
      %c0_38 = arith.constant 0 : index
      %68 = vector.load %arg9[%c0_37, %c0_38] : memref<8x1xi32, #tpu.memory_space<vmem>>, vector<8x1xi32>
      %c0_39 = arith.constant 0 : index
      %c0_40 = arith.constant 0 : index
      %69 = vector.load %arg5[%c0_39, %c0_40] : memref<8x1xi32, #tpu.memory_space<vmem>>, vector<8x1xi32>
      tpu.vector_store %arg5[%c0_39, %c0_40], %68 {strides = array<i32>} : memref<8x1xi32, #tpu.memory_space<vmem>>, vector<8x1xi32>,
    } else {
    }
    return
  }
  func.func @transform_0(%arg0: i32, %arg1: i32) -> (i32, i32) {
    %c0_i32 = arith.constant 0 : i32
    return %arg0, %arg1 : i32, i32
  }
  func.func @transform_1(%arg0: i32, %arg1: i32) -> (i32, i32) {
    %c0_i32 = arith.constant 0 : i32
    %c0_i32_0 = arith.constant 0 : i32
    return %arg0, %c0_i32 : i32, i32
  }
  func.func @transform_2(%arg0: i32, %arg1: i32) -> (i32, i32) {
    %c0_i32 = arith.constant 0 : i32
    %c0_i32_0 = arith.constant 0 : i32
    return %arg0, %c0_i32 : i32, i32
  }
  func.func @transform_3(%arg0: i32, %arg1: i32) -> (i32, i32) {
    %c0_i32 = arith.constant 0 : i32
    %c0_i32_0 = arith.constant 0 : i32
    return %arg0, %c0_i32 : i32, i32
  }
}

</mosaic_0001>

<llo_original>
// kernel: tpu_custom_call.1
$region0: #{tpu_custom_call.1}
  #allocation0 [shape = 'u32[]', space=smem, size = 0x4, offset = 0x4, fixed_abs, tag = 'smem constant byte address 0x4 - core index']
  #allocation1 [shape = 'u32[144,128]{1,0:T(1,128)}', space=vmem, size = 0x12000, scoped, tag = 'internal scratch']
  #allocation2 [shape = 'f32[8,1]{1,0:T(8,128)}', space=vmem, size = 0x1000, scoped, tag = 'scratch operand']
  #allocation3 [shape = 'f32[8,1]{1,0:T(8,128)}', space=vmem, size = 0x1000, scoped, tag = 'scratch operand']
  #allocation4 [shape = 'f32[8,1]{1,0:T(8,128)}', space=vmem, size = 0x1000, scoped, tag = 'scratch operand']
  #allocation5 [shape = 's32[8,1]{1,0:T(8,128)}', space=vmem, size = 0x1000, scoped, tag = 'scratch operand']
  %s0 = inlined_call_operand.vmem [shape: f32[8,32], index: 0, kind: input, shape index: {}]
  %s1 = inlined_call_operand.vmem [shape: s32[8,1], index: 1, kind: input, shape index: {}]
  %s2 = inlined_call_operand.vmem [shape: f32[8,1], index: 2, kind: output, shape index: {0}]
  %s3 = inlined_call_operand.vmem [shape: s32[8,1], index: 3, kind: output, shape index: {1}]
  %4 = xla_tuple %s2, %s3
  %s5 = sld [smem:[#allocation0]]
  $region34: #{tpu_custom_call.1} parent=0
    _
  %s7 = ssub.s32 1, %s5
  %s8 = scalar_select 0, %s7, %s5
  // Predicated region
  $region2: #{tpu_custom_call.1} parent=0 // pred_check
    _
  $region3: #{tpu_custom_call.1} parent=0 // pred_check_branch
    %10 = sbr.rel (0) target = $region5
  $region4: #{tpu_custom_call.1} parent=0 // pred_region
    _
  $region5: #{tpu_custom_call.1} parent=0 // pred_fallthru
    _
  // Predicated region
  $region6: #{tpu_custom_call.1} parent=0 // pred_check
    _
  $region7: #{tpu_custom_call.1} parent=0 // pred_check_branch
    %12 = sbr.rel (0) target = $region9
  $region8: #{tpu_custom_call.1} parent=0 // pred_region
    _
  $region9: #{tpu_custom_call.1} parent=0 // pred_fallthru
    _
  %p13 = scmp.eq.s32.totalorder 0, 0
  // Predicated region
  $region10: #{tpu_custom_call.1} parent=0 // pred_check
    %p14 = pneg %p13
  $region11: #{tpu_custom_call.1} parent=0 // pred_check_branch
    %16 = sbr.rel (%p14) target = $region13
  $region12: #{tpu_custom_call.1} parent=0 // pred_region
    %vm17 = vcmask 7168
    %18 = vst.msk [vmem:[#allocation2] sm:$0xff] %vm17, -inf
    %19 = vst.msk [vmem:[#allocation3] sm:$0xff] %vm17, 0.0
    %20 = vst.msk [vmem:[#allocation4] sm:$0xff] %vm17, 0.0
    %21 = vst.msk [vmem:[#allocation5] sm:$0xff] %vm17, 0
  $region13: #{tpu_custom_call.1} parent=0 // pred_fallthru
    _
  %v22 = vld [vmem:[%s0] sm:$0xff]
  %v23 = vld [vmem:[%s1] sm:$0xff]
  %v24 = vlaneseq
  %v25 = vand.u32 %v24, 127
  %s26 = smul.u32 0, 128
  %s27 = ssub.s32 32, %s26
  %v28 = vstv %s27
  %vm29 = vcmp.lt.s32.totalorder %v25, %v28
  %v30 = vsel %vm29, 1, 0
  %vm31 = vcmp.eq.s32.totalorder %v30, 1
  %v32 = vsel %vm31, %v22, -1e+30
  %33 = vmax.xlane.f32.xlu0 %v32
  %v34 = vpop.xlane.xlu0 %33
  %vm35 = vcmp.eq.f32.partialorder %v32, %v34
  %v36 = vsel %vm35, %v25, 1073741824
  %v37 = vand.u32 %v36, 65535
  %v38 = vshra.s32 %v36, 16
  %v39 = vcvt.s32.f32 %v37
  %v40 = vcvt.s32.f32 %v38
  %41 = vmin.xlane.f32.xlu0 %v40
  %v42 = vpop.xlane.xlu0 %41
  %vm43 = vcmp.eq.f32.partialorder %v40, %v42
  %v44 = vsel %vm43, %v39, inf
  %45 = vmin.xlane.f32.xlu0 %v44
  %v46 = vpop.xlane.xlu0 %45
  %v47 = vcvt.f32.s32 %v46
  %v48 = vcvt.f32.s32 %v42
  %v49 = vshll.u32 %v48, 16
  %v50 = vadd.s32 %v49, %v47
  %v51 = vstv %s26
  %v52 = vadd.s32 %v50, %v51
  %v53 = vsub.s32 %v23, %v51
  %54 = vset.pattern.permute.xlu0 0
  %55 = vperm.xlu0 %54, %v53
  %v56 = vpop.permute.xlu0 %55
  %vm57 = vcmp.eq.s32.totalorder %v25, %v56
  %v58 = vsel %vm57, %v32, 0.0
  %59 = vadd.xlane.f32.xlu0 %v58
  %v60 = vpop.xlane.xlu0 %59
  %v61 = vld [vmem:[#allocation2] sm:$0xff]
  %v62 = vmax.f32 %v61, %v34
  %vm63 = vcmp.gt.f32.partialorder %v34, %v61
  %v64 = vld [vmem:[#allocation5] sm:$0xff]
  %v65 = vsel %vm63, %v52, %v64
  %vm66 = vcmask 7168
  %67 = vst.msk [vmem:[#allocation5] sm:$0xff] %vm66, %v65
  %v68 = vld [vmem:[#allocation3] sm:$0xff]
  %v69 = vsub.f32 %v61, %v62
  %v70 = vmul.f32 %v69, 1.442695
  %v71 = vpow.pop %v70
  %v72 = vmul.f32 %v68, %v71
  %74 = vset.pattern.permute.xlu0 0
  %75 = vperm.xlu0 %74, %v62
  %v76 = vpop.permute.xlu0 %75
  %v78 = vsub.f32 %v32, %v76
  %v79 = vmul.f32 %v78, 1.442695
  %v80 = vpow.pop %v79
  %81 = vadd.xlane.f32.xlu0 %v80
  %v82 = vpop.xlane.xlu0 %81
  %v83 = vadd.f32 %v72, %v82
  %84 = vst.msk [vmem:[#allocation3] sm:$0xff] %vm66, %v83
  %85 = vst.msk [vmem:[#allocation2] sm:$0xff] %vm66, %v62
  %v86 = vld [vmem:[#allocation4] sm:$0xff]
  %v87 = vadd.f32 %v86, %v60
  %88 = vst.msk [vmem:[#allocation4] sm:$0xff] %vm66, %v87
  // Predicated region
  $region14: #{tpu_custom_call.1} parent=0 // pred_check
    %p89 = pneg %p13
  $region15: #{tpu_custom_call.1} parent=0 // pred_check_branch
    %91 = sbr.rel (%p89) target = $region17
  $region16: #{tpu_custom_call.1} parent=0 // pred_region
    %v92 = vld [vmem:[#allocation2] sm:$0xff]
    %v93 = vld [vmem:[#allocation3] sm:$0xff]
    %v94 = vlog2.pop %v93
    %v95 = vmul.f32 %v94, 0.6931472
    %v96 = vadd.f32 %v92, %v95
    %v97 = vld [vmem:[#allocation4] sm:$0xff]
    %v98 = vsub.f32 %v96, %v97
    %99 = vst.msk [vmem:[%s2] sm:$0xff] %vm66, %v98
    %v100 = vld [vmem:[#allocation5] sm:$0xff]
    %101 = vst.msk [vmem:[%s3] sm:$0xff] %vm66, %v100
  $region17: #{tpu_custom_call.1} parent=0 // pred_fallthru
    _
  // Predicated region
  $region18: #{tpu_custom_call.1} parent=0 // pred_check
    _
  $region19: #{tpu_custom_call.1} parent=0 // pred_check_branch
    %103 = sbr.rel (0) target = $region21
  $region20: #{tpu_custom_call.1} parent=0 // pred_region
    _
  $region21: #{tpu_custom_call.1} parent=0 // pred_fallthru
    _
  // Predicated region
  $region22: #{tpu_custom_call.1} parent=0 // pred_check
    _
  $region23: #{tpu_custom_call.1} parent=0 // pred_check_branch
    %105 = sbr.rel (0) target = $region25
  $region24: #{tpu_custom_call.1} parent=0 // pred_region
    _
  $region25: #{tpu_custom_call.1} parent=0 // pred_fallthru
    _
  // Predicated region
  $region26: #{tpu_custom_call.1} parent=0 // pred_check
    _
  $region27: #{tpu_custom_call.1} parent=0 // pred_check_branch
    %107 = sbr.rel (0) target = $region29
  $region28: #{tpu_custom_call.1} parent=0 // pred_region
    _
  $region29: #{tpu_custom_call.1} parent=0 // pred_fallthru
    _
  // Predicated region
  $region30: #{tpu_custom_call.1} parent=0 // pred_check
    _
  $region31: #{tpu_custom_call.1} parent=0 // pred_check_branch
    %109 = sbr.rel (0) target = $region33
  $region32: #{tpu_custom_call.1} parent=0 // pred_region
    _
  $region33: #{tpu_custom_call.1} parent=0 // pred_fallthru
    _

</llo_original>
